<compile_context>
chip_gen: v7x
topology: tpu7x:2x2x1
jax: 0.10.0
libtpu: 0.0.40
codegen_flags: <defaults>
</compile_context>

<pallas_src>
import jax
import jax.numpy as jnp
import numpy as np
from jax.experimental import pallas as pl
from jax.experimental.pallas import tpu as pltpu

NEG_SLOPE = 0.2   # nn.LeakyReLU(0.2)
LANE = 128


def _leaky(x):
    return jnp.where(x > 0, x, NEG_SLOPE * x)


def _mm(a, b):
    # bf16 multiply on the MXU (DEFAULT precision numerics), f32 accumulation.
    return jnp.dot(a.astype(jnp.bfloat16), b, preferred_element_type=jnp.float32)


def decoder_kernel(x_ref, w1_ref, b1_ref, w2_ref, b2_ref, wl_ref, bl_ref, o_ref):
    Bb, T, Cin = x_ref.shape
    M = Bb * T
    Ch4 = w1_ref.shape[1]            # 4 * hidden_size
    Ch = Ch4 // 4

    # bf16 input -> f32 for the shift/select/activation (VPU) path; matmul
    # operands are cast back to bf16 inside _mm (matches DEFAULT MXU precision).
    x = x_ref[...].astype(jnp.float32).reshape(M, Cin)

    # Seam masks of the folded batch dimension, hoisted and shared by all shifts.
    rows = jax.lax.broadcasted_iota(jnp.int32, (M, 1), 0)
    first_row = (rows % T) == 0          # m == 0     within each batch element
    last_row = (rows % T) == T - 1       # m == T - 1 within each batch element

    def shift_down(v):                   # v[m-1], zeroed at batch seams
        return jnp.where(first_row, 0.0, pltpu.roll(v, 1, 0))

    def shift_up(v):                     # v[m+1], zeroed at batch seams
        return jnp.where(last_row, 0.0, pltpu.roll(v, M - 1, 0))

    # ---- layer 1: ConvTranspose1d(Cin -> Ch, k=4, s=2, p=1) + LeakyReLU ---------
    #   e1[m] = x[m-1] @ W3 + x[m]   @ W1 + b1    (even output positions)
    #   o1[m] = x[m]   @ W2 + x[m+1] @ W0 + b1    (odd  output positions)
    # ONE matmul, K = 3*Cin, N = 4*Ch, emitting [o1 | e1 | o1 | e1] lane-packed.
    x3 = jnp.concatenate([shift_down(x), x, shift_up(x)], axis=-1)    # (M, 3*Cin)
    h = _leaky(_mm(x3, w1_ref[...]) + b1_ref[...])                    # (M, 4*Ch) f32

    # ---- layer 2: ConvTranspose1d(Ch -> Cout, k=4, s=2, p=1) + LeakyReLU --------
    #   r0[m] = o1[m-1]@V3 + e1[m]@V1        r1[m] = e1[m]@V2 + o1[m]@V0
    #   r2[m] = e1[m]  @V3 + o1[m]@V1        r3[m] = o1[m]@V2 + e1[m+1]@V0
    # Operand [o1_{m-1} | e1_m | o1_m | e1_{m+1}] is built from the [o1|e1|o1|e1]
    # packing with sublane rolls + a lane-iota select (no lane slicing / concat).
    lane = jax.lax.broadcasted_iota(jnp.int32, (M, Ch4), 1)
    g = jnp.where(lane < Ch, shift_down(h),
                  jnp.where(lane < 3 * Ch, h, shift_up(h)))           # (M, 4*Ch)
    r = _leaky(_mm(g, w2_ref[...]) + b2_ref[...])                     # (M, 4*Cout)

    # ---- out_net: Linear(Cout -> Cout) on the lane-packed phases ----------------
    y = _mm(r, wl_ref[...]) + bl_ref[...]                             # (M, 4*Cout)

    # Output block is either (Bb, T*4*Cout/128, 128) (lane-dense, unmasked stores)
    # or the natural (Bb, T, 4*Cout); both hold identical row-major data.
    o_ref[...] = y.reshape(o_ref.shape)


def _pick_tiling(B, T):
    """Pick (batch_block, vmem_limit_bytes) for the current TPU generation."""
    try:
        kind = jax.devices()[0].device_kind.lower()
    except Exception:  # pragma: no cover
        kind = ""
    is_v7 = "v7" in kind
    # Rough live-VMEM bytes per folded row: ~10 f32 (rows,128)-padded activation
    # planes + double-buffered bf16 input / f32 output blocks.
    bytes_per_row = 10 * LANE * 4 + 2 * LANE * 2 + 2 * LANE * 4
    if is_v7:
        # 2 TensorCores, 64 MiB physical / 32 MiB default-scoped VMEM per core:
        # keep blocks modest and force >= 2 grid blocks so both cores get work.
        row_cap = min(1024, (20 << 20) // bytes_per_row)
        min_blocks, vmem_limit = 2, None
    else:
        # v5e / v6e: 128 MiB VMEM, one TensorCore: large blocks + raised scoped
        # VMEM limit amortize the ~0.35us per-grid-step overhead.
        row_cap = min(4096, (48 << 20) // bytes_per_row)
        min_blocks, vmem_limit = 1, 64 << 20
    row_cap = max(row_cap, T)
    # TODO(synk): a single batch element longer than row_cap would need a T-tiled
    # grid with conv-halo handling; not required at these sizes.
    divisors = [bb for bb in range(1, B + 1) if B % bb == 0]
    cands = [bb for bb in divisors if bb * T <= row_cap and B // bb >= min_blocks]
    if not cands:
        cands = [bb for bb in divisors if bb * T <= row_cap] or [1]
    return max(cands), vmem_limit


def movement_conv_decoder(x, w1p, b1p, w2p, b2p, wl4, bl4):
    """Fused MovementConvDecoder forward.

    x   : (B, T, Cin) activations; w1p/b1p/w2p/b2p/wl4/bl4: packed params (see
    pack_params).  Returns (B, 4*T, Cout) float32.
    """
    B, T, Cin = x.shape
    Co4 = w2p.shape[1]
    Cout = Co4 // 4

    x = x.astype(jnp.bfloat16)
    w1p = jnp.asarray(w1p, jnp.bfloat16)
    w2p = jnp.asarray(w2p, jnp.bfloat16)
    wl4 = jnp.asarray(wl4, jnp.bfloat16)
    b1p = jnp.asarray(b1p, jnp.float32)
    b2p = jnp.asarray(b2p, jnp.float32)
    bl4 = jnp.asarray(bl4, jnp.float32)

    batch_block, vmem_limit = _pick_tiling(B, T)
    num_blocks = B // batch_block

    def run(out_rows, out_lanes):
        grid_spec = pltpu.PrefetchScalarGridSpec(
            num_scalar_prefetch=0,
            grid=(num_blocks,),
            in_specs=[
                pl.BlockSpec((batch_block, T, Cin), lambda b: (b, 0, 0)),
                pl.BlockSpec(w1p.shape, lambda b: (0, 0)),
                pl.BlockSpec(b1p.shape, lambda b: (0, 0)),
                pl.BlockSpec(w2p.shape, lambda b: (0, 0)),
                pl.BlockSpec(b2p.shape, lambda b: (0, 0)),
                pl.BlockSpec(wl4.shape, lambda b: (0, 0)),
                pl.BlockSpec(bl4.shape, lambda b: (0, 0)),
            ],
            out_specs=pl.BlockSpec((batch_block, out_rows, out_lanes),
                                   lambda b: (b, 0, 0)),
        )
        out = pl.pallas_call(
            decoder_kernel,
            out_shape=jax.ShapeDtypeStruct((B, out_rows, out_lanes), jnp.float32),
            grid_spec=grid_spec,
            compiler_params=pltpu.CompilerParams(
                dimension_semantics=("parallel",),
                vmem_limit_bytes=vmem_limit,
            ),
        )(x, w1p, b1p, w2p, b2p, wl4, bl4)
        # Force compile/execute here so a rejected layout can fall back cleanly.
        return jax.block_until_ready(out)

    if (T * Co4) % LANE == 0:
        try:
            out = run((T * Co4) // LANE, LANE)     # 128-lane-dense output block
        except Exception:
            out = run(T, Co4)                      # natural layout fallback
    else:
        out = run(T, Co4)
    # Either output layout is a free row-major view of (B, 4*T, Cout).
    return out.reshape(B, 4 * T, Cout)


def pack_params(W1_pt, b1, W2_pt, b2, WL_pt, bL):
    """Pack PyTorch-layout parameters for the fused kernel.

    W1_pt: (Cin, Ch, 4)   nn.ConvTranspose1d #1 weight
    W2_pt: (Ch, Cout, 4)  nn.ConvTranspose1d #2 weight
    WL_pt: (Cout, Cout)   nn.Linear weight (y = x @ WL_pt.T + bL)
    """
    W1_pt = jnp.asarray(W1_pt, jnp.float32)
    W2_pt = jnp.asarray(W2_pt, jnp.float32)
    WL_pt = jnp.asarray(WL_pt, jnp.float32)
    Cin, Ch, _ = W1_pt.shape
    Cout = W2_pt.shape[1]

    # layer 1: K rows = [x_{m-1} | x_m | x_{m+1}], N cols = [o1 | e1 | o1 | e1]
    z1 = jnp.zeros((Cin, Ch), jnp.float32)
    o_cols = jnp.concatenate([z1, W1_pt[:, :, 2], W1_pt[:, :, 0]], axis=0)  # (3Cin, Ch)
    e_cols = jnp.concatenate([W1_pt[:, :, 3], W1_pt[:, :, 1], z1], axis=0)
    w1p = jnp.concatenate([o_cols, e_cols, o_cols, e_cols], axis=1)         # (3Cin, 4Ch)
    b1p = jnp.tile(jnp.asarray(b1, jnp.float32).reshape(1, Ch), (1, 4))

    # layer 2: K rows = [o1_{m-1} | e1_m | o1_m | e1_{m+1}], N cols = [r0|r1|r2|r3]
    V = [W2_pt[:, :, k] for k in range(4)]
    z2 = jnp.zeros((Ch, Cout), jnp.float32)
    w2p = jnp.concatenate([
        jnp.concatenate([V[3], z2,   z2,   z2  ], axis=1),   # from o1[m-1]
        jnp.concatenate([V[1], V[2], V[3], z2  ], axis=1),   # from e1[m]
        jnp.concatenate([z2,   V[0], V[1], V[2]], axis=1),   # from o1[m]
        jnp.concatenate([z2,   z2,   z2,   V[0]], axis=1),   # from e1[m+1]
    ], axis=0)                                                              # (4Ch, 4Cout)
    b2p = jnp.tile(jnp.asarray(b2, jnp.float32).reshape(1, Cout), (1, 4))

    # out_net Linear on the lane-packed [r0|r1|r2|r3]: block-diagonal WL^T.
    wl4 = jnp.kron(jnp.eye(4, dtype=jnp.float32), WL_pt.T)                  # (4Cout, 4Cout)
    bl4 = jnp.tile(jnp.asarray(bL, jnp.float32).reshape(1, Cout), (1, 4))

    return (w1p.astype(jnp.bfloat16), b1p,
            w2p.astype(jnp.bfloat16), b2p,
            wl4.astype(jnp.bfloat16), bl4)


def xavier_normal(key, shape, fan_in, fan_out):
    std = float(np.sqrt(2.0 / (fan_in + fan_out)))
    return jax.random.normal(key, shape, jnp.float32) * std


def ref_forward(x, W1, b1, W2, b2, WL, bL):
    # numpy reference of the PyTorch forward (x: (B, T, Cin)); W*: PyTorch layouts.
    def convt(h, W, b):  # W: (Ci, Co, 4) (nn.ConvTranspose1d weight layout)
        B, T, _ = h.shape
        Co = W.shape[1]
        out = np.zeros((B, 2 * T, Co), np.float32)
        for t in range(T):
            for k in range(4):
                j = 2 * t + k - 1
                if 0 <= j < 2 * T:
                    out[:, j, :] += h[:, t, :] @ W[:, :, k]
        return out + b

    def lrelu(v):
        return np.where(v > 0, v, NEG_SLOPE * v)

    h = lrelu(convt(np.asarray(x), np.asarray(W1), np.asarray(b1)))
    h = lrelu(convt(h, np.asarray(W2), np.asarray(b2)))
    return h @ np.asarray(WL).T + np.asarray(bL)


if __name__ == "__main__":
    B, T = 2, 8
    input_size, hidden_size, output_size = 32, 24, 16

    key = jax.random.PRNGKey(0)
    kx, k1, k2, k3, kb1, kb2, kb3 = jax.random.split(key, 7)

    x = jax.random.normal(kx, (B, T, input_size), jnp.float32)

    # PyTorch parameter layouts (synthetic deterministic init; biases made nonzero
    # to exercise the bias-add path — the real module inits them to 0).
    W1_pt = xavier_normal(k1, (input_size, hidden_size, 4), hidden_size * 4, input_size * 4)
    W2_pt = xavier_normal(k2, (hidden_size, output_size, 4), output_size * 4, hidden_size * 4)
    WL_pt = xavier_normal(k3, (output_size, output_size), output_size, output_size)
    b1 = 0.1 * jax.random.normal(kb1, (hidden_size,), jnp.float32)
    b2 = 0.1 * jax.random.normal(kb2, (output_size,), jnp.float32)
    bL = 0.1 * jax.random.normal(kb3, (output_size,), jnp.float32)

    params = pack_params(W1_pt, b1, W2_pt, b2, WL_pt, bL)
    out = movement_conv_decoder(x, *params)
    out = jax.block_until_ready(out)

    ref = ref_forward(x, W1_pt, b1, W2_pt, b2, WL_pt, bL)
    assert out.shape == (B, 4 * T, output_size)
    # bf16 inputs/weights on the MXU (DEFAULT precision) vs. f32 numpy reference.
    np.testing.assert_allclose(np.asarray(out), ref, rtol=5e-2, atol=5e-2)
    print("KERNEL_OK")
</pallas_src>

<mosaic_0001>
module attributes {stable_mosaic.version = 11 : i64} {
  func.func @decoder_kernel(%arg0: i32, %arg1: memref<2x8x32xbf16, #tpu.memory_space<vmem>>, %arg2: memref<96x96xbf16, #tpu.memory_space<vmem>>, %arg3: memref<1x96xf32, #tpu.memory_space<vmem>>, %arg4: memref<96x64xbf16, #tpu.memory_space<vmem>>, %arg5: memref<1x64xf32, #tpu.memory_space<vmem>>, %arg6: memref<64x64xbf16, #tpu.memory_space<vmem>>, %arg7: memref<1x64xf32, #tpu.memory_space<vmem>>, %arg8: memref<2x4x128xf32, #tpu.memory_space<vmem>>) attributes {dimension_semantics = [#tpu.dimension_semantics<parallel>], iteration_bounds = array<i64: 1>, scalar_prefetch = 0 : i64, scratch_operands = 0 : i64, tpu.core_type = #tpu.core_type<tc>, window_params = [{transform_indices = @transform_0, window_bounds = array<i64: 2, 8, 32>}, {pipeline_mode = #tpu.pipeline_mode<synchronous>, transform_indices = @transform_1, window_bounds = array<i64: 96, 96>}, {pipeline_mode = #tpu.pipeline_mode<synchronous>, transform_indices = @transform_2, window_bounds = array<i64: 1, 96>}, {pipeline_mode = #tpu.pipeline_mode<synchronous>, transform_indices = @transform_3, window_bounds = array<i64: 96, 64>}, {pipeline_mode = #tpu.pipeline_mode<synchronous>, transform_indices = @transform_4, window_bounds = array<i64: 1, 64>}, {pipeline_mode = #tpu.pipeline_mode<synchronous>, transform_indices = @transform_5, window_bounds = array<i64: 64, 64>}, {pipeline_mode = #tpu.pipeline_mode<synchronous>, transform_indices = @transform_6, window_bounds = array<i64: 1, 64>}, {transform_indices = @transform_7, window_bounds = array<i64: 2, 4, 128>}]} {
    %c0 = arith.constant 0 : index
    %c0_0 = arith.constant 0 : index
    %c0_1 = arith.constant 0 : index
    %0 = vector.load %arg1[%c0, %c0_0, %c0_1] : memref<2x8x32xbf16, #tpu.memory_space<vmem>>, vector<2x8x32xbf16>
    %1 = arith.extf %0 : vector<2x8x32xbf16> to vector<2x8x32xf32>
    %2 = vector.shape_cast %1 : vector<2x8x32xf32> to vector<16x32xf32>
    %3 = tpu.iota {dimensions = array<i32: 0>} : vector<16x1xi32>
    %c8_i32 = arith.constant 8 : i32
    %c0_i32 = arith.constant 0 : i32
    %4 = arith.cmpi eq, %c8_i32, %c0_i32 : i32
    %c1_i32 = arith.constant 1 : i32
    %5 = arith.select %4, %c1_i32, %c8_i32 : i32
    %6 = vector.broadcast %5 : i32 to vector<16x1xi32>
    %7 = arith.remsi %3, %6 : vector<16x1xi32>
    %c0_i32_2 = arith.constant 0 : i32
    %8 = vector.broadcast %c0_i32_2 : i32 to vector<16x1xi32>
    %9 = arith.cmpi ne, %7, %8 : vector<16x1xi32>
    %c0_i32_3 = arith.constant 0 : i32
    %10 = vector.broadcast %c0_i32_3 : i32 to vector<16x1xi32>
    %11 = arith.cmpi slt, %7, %10 : vector<16x1xi32>
    %c0_i32_4 = arith.constant 0 : i32
    %12 = arith.cmpi slt, %5, %c0_i32_4 : i32
    %13 = vector.broadcast %12 : i1 to vector<16x1xi1>
    %14 = vector.broadcast %13 : vector<16x1xi1> to vector<16x1xi1>
    %15 = arith.xori %11, %14 : vector<16x1xi1>
    %16 = arith.andi %15, %9 : vector<16x1xi1>
    %17 = vector.broadcast %5 : i32 to vector<16x1xi32>
    %18 = arith.addi %7, %17 : vector<16x1xi32>
    %19 = arith.select %16, %18, %7 : vector<16x1xi1>, vector<16x1xi32>
    %c0_i32_5 = arith.constant 0 : i32
    %20 = vector.broadcast %c0_i32_5 : i32 to vector<16x1xi32>
    %21 = arith.cmpi eq, %19, %20 : vector<16x1xi32>
    %c8_i32_6 = arith.constant 8 : i32
    %c0_i32_7 = arith.constant 0 : i32
    %22 = arith.cmpi eq, %c8_i32_6, %c0_i32_7 : i32
    %c1_i32_8 = arith.constant 1 : i32
    %23 = arith.select %22, %c1_i32_8, %c8_i32_6 : i32
    %24 = vector.broadcast %23 : i32 to vector<16x1xi32>
    %25 = arith.remsi %3, %24 : vector<16x1xi32>
    %c0_i32_9 = arith.constant 0 : i32
    %26 = vector.broadcast %c0_i32_9 : i32 to vector<16x1xi32>
    %27 = arith.cmpi ne, %25, %26 : vector<16x1xi32>
    %c0_i32_10 = arith.constant 0 : i32
    %28 = vector.broadcast %c0_i32_10 : i32 to vector<16x1xi32>
    %29 = arith.cmpi slt, %25, %28 : vector<16x1xi32>
    %c0_i32_11 = arith.constant 0 : i32
    %30 = arith.cmpi slt, %23, %c0_i32_11 : i32
    %31 = vector.broadcast %30 : i1 to vector<16x1xi1>
    %32 = vector.broadcast %31 : vector<16x1xi1> to vector<16x1xi1>
    %33 = arith.xori %29, %32 : vector<16x1xi1>
    %34 = arith.andi %33, %27 : vector<16x1xi1>
    %35 = vector.broadcast %23 : i32 to vector<16x1xi32>
    %36 = arith.addi %25, %35 : vector<16x1xi32>
    %37 = arith.select %34, %36, %25 : vector<16x1xi1>, vector<16x1xi32>
    %c7_i32 = arith.constant 7 : i32
    %38 = vector.broadcast %c7_i32 : i32 to vector<16x1xi32>
    %39 = arith.cmpi eq, %37, %38 : vector<16x1xi32>
    %c1_i32_12 = arith.constant 1 : i32
    %40 = tpu.dynamic_rotate %2 by %c1_i32_12 dim 0 : vector<16x32xf32>, i32 -> vector<16x32xf32>
    %cst = arith.constant 0.000000e+00 : f32
    %41 = vector.shape_cast %21 : vector<16x1xi1> to vector<16x1xi1>
    %42 = vector.broadcast %41 : vector<16x1xi1> to vector<16x32xi1>
    %43 = vector.broadcast %cst : f32 to vector<16x32xf32>
    %44 = arith.select %42, %43, %40 : vector<16x32xi1>, vector<16x32xf32>
    %c15_i32 = arith.constant 15 : i32
    %45 = tpu.dynamic_rotate %2 by %c15_i32 dim 0 : vector<16x32xf32>, i32 -> vector<16x32xf32>
    %cst_13 = arith.constant 0.000000e+00 : f32
    %46 = vector.shape_cast %39 : vector<16x1xi1> to vector<16x1xi1>
    %47 = vector.broadcast %46 : vector<16x1xi1> to vector<16x32xi1>
    %48 = vector.broadcast %cst_13 : f32 to vector<16x32xf32>
    %49 = arith.select %47, %48, %45 : vector<16x32xi1>, vector<16x32xf32>
    %50 = tpu.concatenate %44, %2, %49 in 1 : vector<16x32xf32>, vector<16x32xf32>, vector<16x32xf32> -> vector<16x96xf32>
    %c0_14 = arith.constant 0 : index
    %c0_15 = arith.constant 0 : index
    %51 = vector.load %arg2[%c0_14, %c0_15] : memref<96x96xbf16, #tpu.memory_space<vmem>>, vector<96x96xbf16>
    %52 = arith.truncf %50 : vector<16x96xf32> to vector<16x96xbf16>
    %cst_16 = arith.constant dense<0.000000e+00> : vector<16x96xf32>
    %53 = tpu.matmul %52, %51, %cst_16 {dimension_numbers = #tpu.dot_dimension_numbers<[1], [0], [0], [1], [0, 0, 1, 1], [], []>} : vector<16x96xbf16>, vector<96x96xbf16>, vector<16x96xf32> -> vector<16x96xf32>
    %c0_17 = arith.constant 0 : index
    %c0_18 = arith.constant 0 : index
    %54 = vector.load %arg3[%c0_17, %c0_18] : memref<1x96xf32, #tpu.memory_space<vmem>>, vector<1x96xf32>
    %55 = vector.broadcast %54 : vector<1x96xf32> to vector<16x96xf32>
    %56 = arith.addf %53, %55 : vector<16x96xf32>
    %cst_19 = arith.constant 0.000000e+00 : f32
    %57 = vector.broadcast %cst_19 : f32 to vector<16x96xf32>
    %58 = arith.cmpf ogt, %56, %57 : vector<16x96xf32>
    %cst_20 = arith.constant 2.000000e-01 : f32
    %59 = vector.broadcast %cst_20 : f32 to vector<16x96xf32>
    %60 = arith.mulf %59, %56 : vector<16x96xf32>
    %61 = arith.select %58, %56, %60 : vector<16x96xi1>, vector<16x96xf32>
    %62 = tpu.iota {dimensions = array<i32: 1>} : vector<16x96xi32>
    %c24_i32 = arith.constant 24 : i32
    %63 = vector.broadcast %c24_i32 : i32 to vector<16x96xi32>
    %64 = arith.cmpi slt, %62, %63 : vector<16x96xi32>
    %c1_i32_21 = arith.constant 1 : i32
    %65 = tpu.dynamic_rotate %61 by %c1_i32_21 dim 0 : vector<16x96xf32>, i32 -> vector<16x96xf32>
    %cst_22 = arith.constant 0.000000e+00 : f32
    %66 = vector.shape_cast %21 : vector<16x1xi1> to vector<16x1xi1>
    %67 = vector.broadcast %66 : vector<16x1xi1> to vector<16x96xi1>
    %68 = vector.broadcast %cst_22 : f32 to vector<16x96xf32>
    %69 = arith.select %67, %68, %65 : vector<16x96xi1>, vector<16x96xf32>
    %c72_i32 = arith.constant 72 : i32
    %70 = vector.broadcast %c72_i32 : i32 to vector<16x96xi32>
    %71 = arith.cmpi slt, %62, %70 : vector<16x96xi32>
    %c15_i32_23 = arith.constant 15 : i32
    %72 = tpu.dynamic_rotate %61 by %c15_i32_23 dim 0 : vector<16x96xf32>, i32 -> vector<16x96xf32>
    %cst_24 = arith.constant 0.000000e+00 : f32
    %73 = vector.shape_cast %39 : vector<16x1xi1> to vector<16x1xi1>
    %74 = vector.broadcast %73 : vector<16x1xi1> to vector<16x96xi1>
    %75 = vector.broadcast %cst_24 : f32 to vector<16x96xf32>
    %76 = arith.select %74, %75, %72 : vector<16x96xi1>, vector<16x96xf32>
    %77 = arith.select %71, %61, %76 : vector<16x96xi1>, vector<16x96xf32>
    %78 = arith.select %64, %69, %77 : vector<16x96xi1>, vector<16x96xf32>
    %c0_25 = arith.constant 0 : index
    %c0_26 = arith.constant 0 : index
    %79 = vector.load %arg4[%c0_25, %c0_26] : memref<96x64xbf16, #tpu.memory_space<vmem>>, vector<96x64xbf16>
    %80 = arith.truncf %78 : vector<16x96xf32> to vector<16x96xbf16>
    %cst_27 = arith.constant dense<0.000000e+00> : vector<16x64xf32>
    %81 = tpu.matmul %80, %79, %cst_27 {dimension_numbers = #tpu.dot_dimension_numbers<[1], [0], [0], [1], [0, 0, 1, 1], [], []>} : vector<16x96xbf16>, vector<96x64xbf16>, vector<16x64xf32> -> vector<16x64xf32>
    %c0_28 = arith.constant 0 : index
    %c0_29 = arith.constant 0 : index
    %82 = vector.load %arg5[%c0_28, %c0_29] : memref<1x64xf32, #tpu.memory_space<vmem>>, vector<1x64xf32>
    %83 = vector.broadcast %82 : vector<1x64xf32> to vector<16x64xf32>
    %84 = arith.addf %81, %83 : vector<16x64xf32>
    %cst_30 = arith.constant 0.000000e+00 : f32
    %85 = vector.broadcast %cst_30 : f32 to vector<16x64xf32>
    %86 = arith.cmpf ogt, %84, %85 : vector<16x64xf32>
    %cst_31 = arith.constant 2.000000e-01 : f32
    %87 = vector.broadcast %cst_31 : f32 to vector<16x64xf32>
    %88 = arith.mulf %87, %84 : vector<16x64xf32>
    %89 = arith.select %86, %84, %88 : vector<16x64xi1>, vector<16x64xf32>
    %c0_32 = arith.constant 0 : index
    %c0_33 = arith.constant 0 : index
    %90 = vector.load %arg6[%c0_32, %c0_33] : memref<64x64xbf16, #tpu.memory_space<vmem>>, vector<64x64xbf16>
    %91 = arith.truncf %89 : vector<16x64xf32> to vector<16x64xbf16>
    %cst_34 = arith.constant dense<0.000000e+00> : vector<16x64xf32>
    %92 = tpu.matmul %91, %90, %cst_34 {dimension_numbers = #tpu.dot_dimension_numbers<[1], [0], [0], [1], [0, 0, 1, 1], [], []>} : vector<16x64xbf16>, vector<64x64xbf16>, vector<16x64xf32> -> vector<16x64xf32>
    %c0_35 = arith.constant 0 : index
    %c0_36 = arith.constant 0 : index
    %93 = vector.load %arg7[%c0_35, %c0_36] : memref<1x64xf32, #tpu.memory_space<vmem>>, vector<1x64xf32>
    %94 = vector.broadcast %93 : vector<1x64xf32> to vector<16x64xf32>
    %95 = arith.addf %92, %94 : vector<16x64xf32>
    %96 = vector.shape_cast %95 : vector<16x64xf32> to vector<2x4x128xf32>
    %c0_37 = arith.constant 0 : index
    %c0_38 = arith.constant 0 : index
    %c0_39 = arith.constant 0 : index
    %97 = vector.load %arg8[%c0_37, %c0_38, %c0_39] : memref<2x4x128xf32, #tpu.memory_space<vmem>>, vector<2x4x128xf32>
    tpu.vector_store %arg8[%c0_37, %c0_38, %c0_39], %96 {strides = array<i32>} : memref<2x4x128xf32, #tpu.memory_space<vmem>>, vector<2x4x128xf32>,
    return
  }
  func.func @transform_0(%arg0: i32) -> (i32, i32, i32) {
    %c0_i32 = arith.constant 0 : i32
    %c0_i32_0 = arith.constant 0 : i32
    %c0_i32_1 = arith.constant 0 : i32
    return %arg0, %c0_i32, %c0_i32_0 : i32, i32, i32
  }
  func.func @transform_1(%arg0: i32) -> (i32, i32) {
    %c0_i32 = arith.constant 0 : i32
    %c0_i32_0 = arith.constant 0 : i32
    %c0_i32_1 = arith.constant 0 : i32
    return %c0_i32, %c0_i32_0 : i32, i32
  }
  func.func @transform_2(%arg0: i32) -> (i32, i32) {
    %c0_i32 = arith.constant 0 : i32
    %c0_i32_0 = arith.constant 0 : i32
    %c0_i32_1 = arith.constant 0 : i32
    return %c0_i32, %c0_i32_0 : i32, i32
  }
  func.func @transform_3(%arg0: i32) -> (i32, i32) {
    %c0_i32 = arith.constant 0 : i32
    %c0_i32_0 = arith.constant 0 : i32
    %c0_i32_1 = arith.constant 0 : i32
    return %c0_i32, %c0_i32_0 : i32, i32
  }
  func.func @transform_4(%arg0: i32) -> (i32, i32) {
    %c0_i32 = arith.constant 0 : i32
    %c0_i32_0 = arith.constant 0 : i32
    %c0_i32_1 = arith.constant 0 : i32
    return %c0_i32, %c0_i32_0 : i32, i32
  }
  func.func @transform_5(%arg0: i32) -> (i32, i32) {
    %c0_i32 = arith.constant 0 : i32
    %c0_i32_0 = arith.constant 0 : i32
    %c0_i32_1 = arith.constant 0 : i32
    return %c0_i32, %c0_i32_0 : i32, i32
  }
  func.func @transform_6(%arg0: i32) -> (i32, i32) {
    %c0_i32 = arith.constant 0 : i32
    %c0_i32_0 = arith.constant 0 : i32
    %c0_i32_1 = arith.constant 0 : i32
    return %c0_i32, %c0_i32_0 : i32, i32
  }
  func.func @transform_7(%arg0: i32) -> (i32, i32, i32) {
    %c0_i32 = arith.constant 0 : i32
    %c0_i32_0 = arith.constant 0 : i32
    %c0_i32_1 = arith.constant 0 : i32
    return %arg0, %c0_i32, %c0_i32_0 : i32, i32, i32
  }
}

module attributes {stable_mosaic.version = 11 : i64} {
  func.func @decoder_kernel(%arg0: i32, %arg1: memref<2x8x32xbf16, #tpu.memory_space<vmem>>, %arg2: memref<96x96xbf16, #tpu.memory_space<vmem>>, %arg3: memref<1x96xf32, #tpu.memory_space<vmem>>, %arg4: memref<96x64xbf16, #tpu.memory_space<vmem>>, %arg5: memref<1x64xf32, #tpu.memory_space<vmem>>, %arg6: memref<64x64xbf16, #tpu.memory_space<vmem>>, %arg7: memref<1x64xf32, #tpu.memory_space<vmem>>, %arg8: memref<2x8x64xf32, #tpu.memory_space<vmem>>) attributes {dimension_semantics = [#tpu.dimension_semantics<parallel>], iteration_bounds = array<i64: 1>, scalar_prefetch = 0 : i64, scratch_operands = 0 : i64, tpu.core_type = #tpu.core_type<tc>, window_params = [{transform_indices = @transform_0, window_bounds = array<i64: 2, 8, 32>}, {pipeline_mode = #tpu.pipeline_mode<synchronous>, transform_indices = @transform_1, window_bounds = array<i64: 96, 96>}, {pipeline_mode = #tpu.pipeline_mode<synchronous>, transform_indices = @transform_2, window_bounds = array<i64: 1, 96>}, {pipeline_mode = #tpu.pipeline_mode<synchronous>, transform_indices = @transform_3, window_bounds = array<i64: 96, 64>}, {pipeline_mode = #tpu.pipeline_mode<synchronous>, transform_indices = @transform_4, window_bounds = array<i64: 1, 64>}, {pipeline_mode = #tpu.pipeline_mode<synchronous>, transform_indices = @transform_5, window_bounds = array<i64: 64, 64>}, {pipeline_mode = #tpu.pipeline_mode<synchronous>, transform_indices = @transform_6, window_bounds = array<i64: 1, 64>}, {transform_indices = @transform_7, window_bounds = array<i64: 2, 8, 64>}]} {
    %c0 = arith.constant 0 : index
    %c0_0 = arith.constant 0 : index
    %c0_1 = arith.constant 0 : index
    %0 = vector.load %arg1[%c0, %c0_0, %c0_1] : memref<2x8x32xbf16, #tpu.memory_space<vmem>>, vector<2x8x32xbf16>
    %1 = arith.extf %0 : vector<2x8x32xbf16> to vector<2x8x32xf32>
    %2 = vector.shape_cast %1 : vector<2x8x32xf32> to vector<16x32xf32>
    %3 = tpu.iota {dimensions = array<i32: 0>} : vector<16x1xi32>
    %c8_i32 = arith.constant 8 : i32
    %c0_i32 = arith.constant 0 : i32
    %4 = arith.cmpi eq, %c8_i32, %c0_i32 : i32
    %c1_i32 = arith.constant 1 : i32
    %5 = arith.select %4, %c1_i32, %c8_i32 : i32
    %6 = vector.broadcast %5 : i32 to vector<16x1xi32>
    %7 = arith.remsi %3, %6 : vector<16x1xi32>
    %c0_i32_2 = arith.constant 0 : i32
    %8 = vector.broadcast %c0_i32_2 : i32 to vector<16x1xi32>
    %9 = arith.cmpi ne, %7, %8 : vector<16x1xi32>
    %c0_i32_3 = arith.constant 0 : i32
    %10 = vector.broadcast %c0_i32_3 : i32 to vector<16x1xi32>
    %11 = arith.cmpi slt, %7, %10 : vector<16x1xi32>
    %c0_i32_4 = arith.constant 0 : i32
    %12 = arith.cmpi slt, %5, %c0_i32_4 : i32
    %13 = vector.broadcast %12 : i1 to vector<16x1xi1>
    %14 = vector.broadcast %13 : vector<16x1xi1> to vector<16x1xi1>
    %15 = arith.xori %11, %14 : vector<16x1xi1>
    %16 = arith.andi %15, %9 : vector<16x1xi1>
    %17 = vector.broadcast %5 : i32 to vector<16x1xi32>
    %18 = arith.addi %7, %17 : vector<16x1xi32>
    %19 = arith.select %16, %18, %7 : vector<16x1xi1>, vector<16x1xi32>
    %c0_i32_5 = arith.constant 0 : i32
    %20 = vector.broadcast %c0_i32_5 : i32 to vector<16x1xi32>
    %21 = arith.cmpi eq, %19, %20 : vector<16x1xi32>
    %c8_i32_6 = arith.constant 8 : i32
    %c0_i32_7 = arith.constant 0 : i32
    %22 = arith.cmpi eq, %c8_i32_6, %c0_i32_7 : i32
    %c1_i32_8 = arith.constant 1 : i32
    %23 = arith.select %22, %c1_i32_8, %c8_i32_6 : i32
    %24 = vector.broadcast %23 : i32 to vector<16x1xi32>
    %25 = arith.remsi %3, %24 : vector<16x1xi32>
    %c0_i32_9 = arith.constant 0 : i32
    %26 = vector.broadcast %c0_i32_9 : i32 to vector<16x1xi32>
    %27 = arith.cmpi ne, %25, %26 : vector<16x1xi32>
    %c0_i32_10 = arith.constant 0 : i32
    %28 = vector.broadcast %c0_i32_10 : i32 to vector<16x1xi32>
    %29 = arith.cmpi slt, %25, %28 : vector<16x1xi32>
    %c0_i32_11 = arith.constant 0 : i32
    %30 = arith.cmpi slt, %23, %c0_i32_11 : i32
    %31 = vector.broadcast %30 : i1 to vector<16x1xi1>
    %32 = vector.broadcast %31 : vector<16x1xi1> to vector<16x1xi1>
    %33 = arith.xori %29, %32 : vector<16x1xi1>
    %34 = arith.andi %33, %27 : vector<16x1xi1>
    %35 = vector.broadcast %23 : i32 to vector<16x1xi32>
    %36 = arith.addi %25, %35 : vector<16x1xi32>
    %37 = arith.select %34, %36, %25 : vector<16x1xi1>, vector<16x1xi32>
    %c7_i32 = arith.constant 7 : i32
    %38 = vector.broadcast %c7_i32 : i32 to vector<16x1xi32>
    %39 = arith.cmpi eq, %37, %38 : vector<16x1xi32>
    %c1_i32_12 = arith.constant 1 : i32
    %40 = tpu.dynamic_rotate %2 by %c1_i32_12 dim 0 : vector<16x32xf32>, i32 -> vector<16x32xf32>
    %cst = arith.constant 0.000000e+00 : f32
    %41 = vector.shape_cast %21 : vector<16x1xi1> to vector<16x1xi1>
    %42 = vector.broadcast %41 : vector<16x1xi1> to vector<16x32xi1>
    %43 = vector.broadcast %cst : f32 to vector<16x32xf32>
    %44 = arith.select %42, %43, %40 : vector<16x32xi1>, vector<16x32xf32>
    %c15_i32 = arith.constant 15 : i32
    %45 = tpu.dynamic_rotate %2 by %c15_i32 dim 0 : vector<16x32xf32>, i32 -> vector<16x32xf32>
    %cst_13 = arith.constant 0.000000e+00 : f32
    %46 = vector.shape_cast %39 : vector<16x1xi1> to vector<16x1xi1>
    %47 = vector.broadcast %46 : vector<16x1xi1> to vector<16x32xi1>
    %48 = vector.broadcast %cst_13 : f32 to vector<16x32xf32>
    %49 = arith.select %47, %48, %45 : vector<16x32xi1>, vector<16x32xf32>
    %50 = tpu.concatenate %44, %2, %49 in 1 : vector<16x32xf32>, vector<16x32xf32>, vector<16x32xf32> -> vector<16x96xf32>
    %c0_14 = arith.constant 0 : index
    %c0_15 = arith.constant 0 : index
    %51 = vector.load %arg2[%c0_14, %c0_15] : memref<96x96xbf16, #tpu.memory_space<vmem>>, vector<96x96xbf16>
    %52 = arith.truncf %50 : vector<16x96xf32> to vector<16x96xbf16>
    %cst_16 = arith.constant dense<0.000000e+00> : vector<16x96xf32>
    %53 = tpu.matmul %52, %51, %cst_16 {dimension_numbers = #tpu.dot_dimension_numbers<[1], [0], [0], [1], [0, 0, 1, 1], [], []>} : vector<16x96xbf16>, vector<96x96xbf16>, vector<16x96xf32> -> vector<16x96xf32>
    %c0_17 = arith.constant 0 : index
    %c0_18 = arith.constant 0 : index
    %54 = vector.load %arg3[%c0_17, %c0_18] : memref<1x96xf32, #tpu.memory_space<vmem>>, vector<1x96xf32>
    %55 = vector.broadcast %54 : vector<1x96xf32> to vector<16x96xf32>
    %56 = arith.addf %53, %55 : vector<16x96xf32>
    %cst_19 = arith.constant 0.000000e+00 : f32
    %57 = vector.broadcast %cst_19 : f32 to vector<16x96xf32>
    %58 = arith.cmpf ogt, %56, %57 : vector<16x96xf32>
    %cst_20 = arith.constant 2.000000e-01 : f32
    %59 = vector.broadcast %cst_20 : f32 to vector<16x96xf32>
    %60 = arith.mulf %59, %56 : vector<16x96xf32>
    %61 = arith.select %58, %56, %60 : vector<16x96xi1>, vector<16x96xf32>
    %62 = tpu.iota {dimensions = array<i32: 1>} : vector<16x96xi32>
    %c24_i32 = arith.constant 24 : i32
    %63 = vector.broadcast %c24_i32 : i32 to vector<16x96xi32>
    %64 = arith.cmpi slt, %62, %63 : vector<16x96xi32>
    %c1_i32_21 = arith.constant 1 : i32
    %65 = tpu.dynamic_rotate %61 by %c1_i32_21 dim 0 : vector<16x96xf32>, i32 -> vector<16x96xf32>
    %cst_22 = arith.constant 0.000000e+00 : f32
    %66 = vector.shape_cast %21 : vector<16x1xi1> to vector<16x1xi1>
    %67 = vector.broadcast %66 : vector<16x1xi1> to vector<16x96xi1>
    %68 = vector.broadcast %cst_22 : f32 to vector<16x96xf32>
    %69 = arith.select %67, %68, %65 : vector<16x96xi1>, vector<16x96xf32>
    %c72_i32 = arith.constant 72 : i32
    %70 = vector.broadcast %c72_i32 : i32 to vector<16x96xi32>
    %71 = arith.cmpi slt, %62, %70 : vector<16x96xi32>
    %c15_i32_23 = arith.constant 15 : i32
    %72 = tpu.dynamic_rotate %61 by %c15_i32_23 dim 0 : vector<16x96xf32>, i32 -> vector<16x96xf32>
    %cst_24 = arith.constant 0.000000e+00 : f32
    %73 = vector.shape_cast %39 : vector<16x1xi1> to vector<16x1xi1>
    %74 = vector.broadcast %73 : vector<16x1xi1> to vector<16x96xi1>
    %75 = vector.broadcast %cst_24 : f32 to vector<16x96xf32>
    %76 = arith.select %74, %75, %72 : vector<16x96xi1>, vector<16x96xf32>
    %77 = arith.select %71, %61, %76 : vector<16x96xi1>, vector<16x96xf32>
    %78 = arith.select %64, %69, %77 : vector<16x96xi1>, vector<16x96xf32>
    %c0_25 = arith.constant 0 : index
    %c0_26 = arith.constant 0 : index
    %79 = vector.load %arg4[%c0_25, %c0_26] : memref<96x64xbf16, #tpu.memory_space<vmem>>, vector<96x64xbf16>
    %80 = arith.truncf %78 : vector<16x96xf32> to vector<16x96xbf16>
    %cst_27 = arith.constant dense<0.000000e+00> : vector<16x64xf32>
    %81 = tpu.matmul %80, %79, %cst_27 {dimension_numbers = #tpu.dot_dimension_numbers<[1], [0], [0], [1], [0, 0, 1, 1], [], []>} : vector<16x96xbf16>, vector<96x64xbf16>, vector<16x64xf32> -> vector<16x64xf32>
    %c0_28 = arith.constant 0 : index
    %c0_29 = arith.constant 0 : index
    %82 = vector.load %arg5[%c0_28, %c0_29] : memref<1x64xf32, #tpu.memory_space<vmem>>, vector<1x64xf32>
    %83 = vector.broadcast %82 : vector<1x64xf32> to vector<16x64xf32>
    %84 = arith.addf %81, %83 : vector<16x64xf32>
    %cst_30 = arith.constant 0.000000e+00 : f32
    %85 = vector.broadcast %cst_30 : f32 to vector<16x64xf32>
    %86 = arith.cmpf ogt, %84, %85 : vector<16x64xf32>
    %cst_31 = arith.constant 2.000000e-01 : f32
    %87 = vector.broadcast %cst_31 : f32 to vector<16x64xf32>
    %88 = arith.mulf %87, %84 : vector<16x64xf32>
    %89 = arith.select %86, %84, %88 : vector<16x64xi1>, vector<16x64xf32>
    %c0_32 = arith.constant 0 : index
    %c0_33 = arith.constant 0 : index
    %90 = vector.load %arg6[%c0_32, %c0_33] : memref<64x64xbf16, #tpu.memory_space<vmem>>, vector<64x64xbf16>
    %91 = arith.truncf %89 : vector<16x64xf32> to vector<16x64xbf16>
    %cst_34 = arith.constant dense<0.000000e+00> : vector<16x64xf32>
    %92 = tpu.matmul %91, %90, %cst_34 {dimension_numbers = #tpu.dot_dimension_numbers<[1], [0], [0], [1], [0, 0, 1, 1], [], []>} : vector<16x64xbf16>, vector<64x64xbf16>, vector<16x64xf32> -> vector<16x64xf32>
    %c0_35 = arith.constant 0 : index
    %c0_36 = arith.constant 0 : index
    %93 = vector.load %arg7[%c0_35, %c0_36] : memref<1x64xf32, #tpu.memory_space<vmem>>, vector<1x64xf32>
    %94 = vector.broadcast %93 : vector<1x64xf32> to vector<16x64xf32>
    %95 = arith.addf %92, %94 : vector<16x64xf32>
    %96 = vector.shape_cast %95 : vector<16x64xf32> to vector<2x8x64xf32>
    %c0_37 = arith.constant 0 : index
    %c0_38 = arith.constant 0 : index
    %c0_39 = arith.constant 0 : index
    %97 = vector.load %arg8[%c0_37, %c0_38, %c0_39] : memref<2x8x64xf32, #tpu.memory_space<vmem>>, vector<2x8x64xf32>
    tpu.vector_store %arg8[%c0_37, %c0_38, %c0_39], %96 {strides = array<i32>} : memref<2x8x64xf32, #tpu.memory_space<vmem>>, vector<2x8x64xf32>,
    return
  }
  func.func @transform_0(%arg0: i32) -> (i32, i32, i32) {
    %c0_i32 = arith.constant 0 : i32
    %c0_i32_0 = arith.constant 0 : i32
    %c0_i32_1 = arith.constant 0 : i32
    return %arg0, %c0_i32, %c0_i32_0 : i32, i32, i32
  }
  func.func @transform_1(%arg0: i32) -> (i32, i32) {
    %c0_i32 = arith.constant 0 : i32
    %c0_i32_0 = arith.constant 0 : i32
    %c0_i32_1 = arith.constant 0 : i32
    return %c0_i32, %c0_i32_0 : i32, i32
  }
  func.func @transform_2(%arg0: i32) -> (i32, i32) {
    %c0_i32 = arith.constant 0 : i32
    %c0_i32_0 = arith.constant 0 : i32
    %c0_i32_1 = arith.constant 0 : i32
    return %c0_i32, %c0_i32_0 : i32, i32
  }
  func.func @transform_3(%arg0: i32) -> (i32, i32) {
    %c0_i32 = arith.constant 0 : i32
    %c0_i32_0 = arith.constant 0 : i32
    %c0_i32_1 = arith.constant 0 : i32
    return %c0_i32, %c0_i32_0 : i32, i32
  }
  func.func @transform_4(%arg0: i32) -> (i32, i32) {
    %c0_i32 = arith.constant 0 : i32
    %c0_i32_0 = arith.constant 0 : i32
    %c0_i32_1 = arith.constant 0 : i32
    return %c0_i32, %c0_i32_0 : i32, i32
  }
  func.func @transform_5(%arg0: i32) -> (i32, i32) {
    %c0_i32 = arith.constant 0 : i32
    %c0_i32_0 = arith.constant 0 : i32
    %c0_i32_1 = arith.constant 0 : i32
    return %c0_i32, %c0_i32_0 : i32, i32
  }
  func.func @transform_6(%arg0: i32) -> (i32, i32) {
    %c0_i32 = arith.constant 0 : i32
    %c0_i32_0 = arith.constant 0 : i32
    %c0_i32_1 = arith.constant 0 : i32
    return %c0_i32, %c0_i32_0 : i32, i32
  }
  func.func @transform_7(%arg0: i32) -> (i32, i32, i32) {
    %c0_i32 = arith.constant 0 : i32
    %c0_i32_0 = arith.constant 0 : i32
    %c0_i32_1 = arith.constant 0 : i32
    return %arg0, %c0_i32, %c0_i32_0 : i32, i32, i32
  }
}

</mosaic_0001>

<llo_original>
// kernel: tpu_custom_call.1
$region0: #{tpu_custom_call.1}
  #allocation0 [shape = 'u32[]', space=smem, size = 0x4, offset = 0x4, fixed_abs, tag = 'smem constant byte address 0x4 - core index']
  #allocation1 [shape = 'u32[144,128]{1,0:T(1,128)}', space=vmem, size = 0x12000, scoped, tag = 'internal scratch']
  %s0 = inlined_call_operand.hbm [shape: bf16[2,8,32], index: 0, kind: input, shape index: {}]
  %s1 = inlined_call_operand.hbm [shape: bf16[96,96], index: 1, kind: input, shape index: {}]
  %s2 = inlined_call_operand.hbm [shape: f32[1,96], index: 2, kind: input, shape index: {}]
  %s3 = inlined_call_operand.hbm [shape: bf16[96,64], index: 3, kind: input, shape index: {}]
  %s4 = inlined_call_operand.hbm [shape: f32[1,64], index: 4, kind: input, shape index: {}]
  %s5 = inlined_call_operand.hbm [shape: bf16[64,64], index: 5, kind: input, shape index: {}]
  %s6 = inlined_call_operand.hbm [shape: f32[1,64], index: 6, kind: input, shape index: {}]
  %s7 = inlined_call_operand.hbm [shape: f32[2,8,64], index: 7, kind: output, shape index: {}]
  %s8 = sld [smem:[#allocation0]]
  $region66: #{tpu_custom_call.1} parent=0
    _
  %s10 = ssub.s32 1, %s8
  %s11 = scalar_select 0, %s10, %s8
  $region1: #{tpu_custom_call.1} parent=0
    #allocation2 [shape = 'u8[4096]{0}', space=vmem, size = 0x1000, scoped, tag = 'input window, operand 0, single buffered']
    #allocation3 [shape = 's32[1]{0}', space=sflag, size = 0x4, scoped, tag = 'scoped memory for tpu_custom_call.1']
    #allocation4 [shape = 's32[1]{0}', space=sflag, size = 0x4, scoped, tag = 'scoped memory for tpu_custom_call.1']
    #allocation5 [shape = 'u8[24576]{0}', space=vmem, size = 0x6000, scoped, tag = 'input window, operand 1, single buffered']
    #allocation6 [shape = 's32[1]{0}', space=sflag, size = 0x4, scoped, tag = 'scoped memory for tpu_custom_call.1']
    #allocation7 [shape = 'u8[512]{0}', space=vmem, size = 0x400, scoped, tag = 'input window, operand 2, single buffered']
    #allocation8 [shape = 'u8[24576]{0}', space=vmem, size = 0x6000, scoped, tag = 'input window, operand 3, single buffered']
    #allocation9 [shape = 's32[1]{0}', space=sflag, size = 0x4, scoped, tag = 'scoped memory for tpu_custom_call.1']
    #allocation10 [shape = 'u8[512]{0}', space=vmem, size = 0x400, scoped, tag = 'input window, operand 4, single buffered']
    #allocation11 [shape = 'u8[16384]{0}', space=vmem, size = 0x4000, scoped, tag = 'input window, operand 5, single buffered']
    #allocation12 [shape = 's32[1]{0}', space=sflag, size = 0x4, scoped, tag = 'scoped memory for tpu_custom_call.1']
    #allocation13 [shape = 'u8[512]{0}', space=vmem, size = 0x400, scoped, tag = 'input window, operand 6, single buffered']
    #allocation14 [shape = 'u8[8192]{0}', space=vmem, size = 0x2000, scoped, tag = 'output window, operand 0, single buffered']
    %12 = vsyncpa [#allocation3], 0
    %13 = vsyncpa [#allocation6], 0
    %14 = vsyncpa [#allocation9], 0
    %15 = vsyncpa [#allocation12], 0
    %16 = vsyncpa [#allocation4], 0
    // Predicated region
    $region2: #{tpu_custom_call.1} parent=1 // pred_check
      _
    $region3: #{tpu_custom_call.1} parent=1 // pred_check_branch
      %18 = sbr.rel (0) target = $region5
    $region4: #{tpu_custom_call.1} parent=1 // pred_region
      %s20 = ssub.s32 128, 128
      %21 = vsyncadd [#allocation3], %s20
      %s22 = sshll.u32 [#allocation2], 4
      %s23 = int_to_ptr.vmem [resolvable:$true] %s22
      %28 = dma.hbm_to_vmem [thread:$0]  %s0, 128, %s23, [#allocation3], 64, 64, 4
    $region5: #{tpu_custom_call.1} parent=1 // pred_fallthru
      _
    // Predicated region
    $region6: #{tpu_custom_call.1} parent=1 // pred_check
      _
    $region7: #{tpu_custom_call.1} parent=1 // pred_check_branch
      %30 = sbr.rel (0) target = $region9
    $region8: #{tpu_custom_call.1} parent=1 // pred_region
      %s32 = ssub.s32 768, 768
      %33 = vsyncadd [#allocation6], %s32
      %s34 = sshll.u32 [#allocation5], 4
      %s35 = int_to_ptr.vmem [resolvable:$true] %s34
      %40 = dma.hbm_to_vmem [thread:$0]  %s1, 768, %s35, [#allocation6], 64, 64, 4
    $region9: #{tpu_custom_call.1} parent=1 // pred_fallthru
      _
    // Predicated region
    $region10: #{tpu_custom_call.1} parent=1 // pred_check
      _
    $region11: #{tpu_custom_call.1} parent=1 // pred_check_branch
      %42 = sbr.rel (0) target = $region13
    $region12: #{tpu_custom_call.1} parent=1 // pred_region
      %s44 = ssub.s32 16, 16
      %45 = vsyncadd [#allocation6], %s44
      %s47 = sshll.u32 [#allocation7], 4
      %s48 = int_to_ptr.vmem [resolvable:$true] %s47
      %50 = dma.hbm_to_vmem [thread:$0]  %s2, 16, %s48, [#allocation6]
    $region13: #{tpu_custom_call.1} parent=1 // pred_fallthru
      _
    // Predicated region
    $region14: #{tpu_custom_call.1} parent=1 // pred_check
      _
    $region15: #{tpu_custom_call.1} parent=1 // pred_check_branch
      %52 = sbr.rel (0) target = $region17
    $region16: #{tpu_custom_call.1} parent=1 // pred_region
      %s54 = ssub.s32 768, 768
      %55 = vsyncadd [#allocation9], %s54
      %s56 = sshll.u32 [#allocation8], 4
      %s57 = int_to_ptr.vmem [resolvable:$true] %s56
      %62 = dma.hbm_to_vmem [thread:$0]  %s3, 768, %s57, [#allocation9], 64, 64, 4
    $region17: #{tpu_custom_call.1} parent=1 // pred_fallthru
      _
    // Predicated region
    $region18: #{tpu_custom_call.1} parent=1 // pred_check
      _
    $region19: #{tpu_custom_call.1} parent=1 // pred_check_branch
      %64 = sbr.rel (0) target = $region21
    $region20: #{tpu_custom_call.1} parent=1 // pred_region
      %s66 = ssub.s32 16, 16
      %67 = vsyncadd [#allocation9], %s66
      %s69 = sshll.u32 [#allocation10], 4
      %s70 = int_to_ptr.vmem [resolvable:$true] %s69
      %72 = dma.hbm_to_vmem [thread:$0]  %s4, 16, %s70, [#allocation9]
    $region21: #{tpu_custom_call.1} parent=1 // pred_fallthru
      _
    // Predicated region
    $region22: #{tpu_custom_call.1} parent=1 // pred_check
      _
    $region23: #{tpu_custom_call.1} parent=1 // pred_check_branch
      %74 = sbr.rel (0) target = $region25
    $region24: #{tpu_custom_call.1} parent=1 // pred_region
      %s76 = ssub.s32 512, 512
      %77 = vsyncadd [#allocation12], %s76
      %s78 = sshll.u32 [#allocation11], 4
      %s79 = int_to_ptr.vmem [resolvable:$true] %s78
      %84 = dma.hbm_to_vmem [thread:$0]  %s5, 512, %s79, [#allocation12], 64, 64, 4
    $region25: #{tpu_custom_call.1} parent=1 // pred_fallthru
      _
    // Predicated region
    $region26: #{tpu_custom_call.1} parent=1 // pred_check
      _
    $region27: #{tpu_custom_call.1} parent=1 // pred_check_branch
      %86 = sbr.rel (0) target = $region29
    $region28: #{tpu_custom_call.1} parent=1 // pred_region
      %s88 = ssub.s32 16, 16
      %89 = vsyncadd [#allocation12], %s88
      %s91 = sshll.u32 [#allocation13], 4
      %s92 = int_to_ptr.vmem [resolvable:$true] %s91
      %94 = dma.hbm_to_vmem [thread:$0]  %s6, 16, %s92, [#allocation12]
    $region29: #{tpu_custom_call.1} parent=1 // pred_fallthru
      _
    // Predicated region
    $region30: #{tpu_custom_call.1} parent=1 // pred_check
      _
    $region31: #{tpu_custom_call.1} parent=1 // pred_check_branch
      %96 = sbr.rel (0) target = $region33
    $region32: #{tpu_custom_call.1} parent=1 // pred_region
      %97 = dma.done [#allocation3], 128
    $region33: #{tpu_custom_call.1} parent=1 // pred_fallthru
      _
    // Predicated region
    $region34: #{tpu_custom_call.1} parent=1 // pred_check
      _
    $region35: #{tpu_custom_call.1} parent=1 // pred_check_branch
      %99 = sbr.rel (0) target = $region37
    $region36: #{tpu_custom_call.1} parent=1 // pred_region
      %100 = dma.done [#allocation6], 768
    $region37: #{tpu_custom_call.1} parent=1 // pred_fallthru
      _
    // Predicated region
    $region38: #{tpu_custom_call.1} parent=1 // pred_check
      _
    $region39: #{tpu_custom_call.1} parent=1 // pred_check_branch
      %102 = sbr.rel (0) target = $region41
    $region40: #{tpu_custom_call.1} parent=1 // pred_region
      %103 = dma.done [#allocation6], 16
    $region41: #{tpu_custom_call.1} parent=1 // pred_fallthru
      _
    // Predicated region
    $region42: #{tpu_custom_call.1} parent=1 // pred_check
      _
    $region43: #{tpu_custom_call.1} parent=1 // pred_check_branch
      %105 = sbr.rel (0) target = $region45
    $region44: #{tpu_custom_call.1} parent=1 // pred_region
      %106 = dma.done [#allocation9], 768
    $region45: #{tpu_custom_call.1} parent=1 // pred_fallthru
      _
    // Predicated region
    $region46: #{tpu_custom_call.1} parent=1 // pred_check
      _
    $region47: #{tpu_custom_call.1} parent=1 // pred_check_branch
      %108 = sbr.rel (0) target = $region49
    $region48: #{tpu_custom_call.1} parent=1 // pred_region
      %109 = dma.done [#allocation9], 16
    $region49: #{tpu_custom_call.1} parent=1 // pred_fallthru
      _
    // Predicated region
    $region50: #{tpu_custom_call.1} parent=1 // pred_check
      _
    $region51: #{tpu_custom_call.1} parent=1 // pred_check_branch
      %111 = sbr.rel (0) target = $region53
    $region52: #{tpu_custom_call.1} parent=1 // pred_region
      %112 = dma.done [#allocation12], 512
    $region53: #{tpu_custom_call.1} parent=1 // pred_fallthru
      _
    // Predicated region
    $region54: #{tpu_custom_call.1} parent=1 // pred_check
      _
    $region55: #{tpu_custom_call.1} parent=1 // pred_check_branch
      %114 = sbr.rel (0) target = $region57
    $region56: #{tpu_custom_call.1} parent=1 // pred_region
      %115 = dma.done [#allocation12], 16
    $region57: #{tpu_custom_call.1} parent=1 // pred_fallthru
      _
    %v117 = vld [vmem:[#allocation2] sm:$0xf]
    %v118 = vld [vmem:[#allocation2 + $0x4] sm:$0xf]
    %v119 = vunpack.c.l.bf16 %v117
    %v120 = vunpack.c.l.bf16 %v118
    %v121 = vlaneseq
    %v122 = vshrl.u32 %v121, 7
    %v123 = vadd.s32 %v122, 8
    %vm124 = vcmp.lt.s32.totalorder %v122, 0
    %v125 = vsub.s32 0, %v122
    %v126 = vsel %vm124, %v125, %v122
    %v127 = vshrl.u32 %v126, 3
    %v128 = vand.u32 %v126, 7
    %v129 = vsub.s32 0, %v128
    %v130 = vsel %vm124, %v129, %v128
    %vm131 = vcmp.lt.s32.totalorder %v123, 0
    %v132 = vsub.s32 0, %v123
    %v133 = vsel %vm131, %v132, %v123
    %v134 = vshrl.u32 %v133, 3
    %v135 = vand.u32 %v133, 7
    %v136 = vsub.s32 0, %v135
    %v137 = vsel %vm131, %v136, %v135
    %vm138 = vcmp.ne.s32.totalorder %v130, 0
    %vm139 = vcmp.ne.s32.totalorder %v137, 0
    %vm140 = vcmp.lt.s32.totalorder %v130, 0
    %vm141 = vcmp.lt.s32.totalorder %v137, 0
    %vm142 = vmand %vm140, %vm138
    %vm143 = vmand %vm141, %vm139
    %v144 = vadd.s32 %v130, 8
    %v145 = vadd.s32 %v137, 8
    %v146 = vsel %vm142, %v144, %v130
    %v147 = vsel %vm143, %v145, %v137
    %vm148 = vcmp.eq.s32.totalorder %v146, 0
    %vm149 = vcmp.eq.s32.totalorder %v147, 0
    %vm150 = vcmp.eq.s32.totalorder %v146, 7
    %vm151 = vcmp.eq.s32.totalorder %v147, 7
    %v152 = vrot.slane %v119, 7
    %v153 = vrot.slane %v120, 7
    %vm154 = vcmp.lt.s32.totalorder %v122, 1
    %v155 = vsel %vm154, %v152, %v153
    %v156 = vsel %vm154, %v153, %v152
    %v157 = vsel %vm148, 1, 0
    %v158 = vsel %vm149, 1, 0
    %vm159 = vcmp.eq.s32.totalorder %v157, 1
    %vm160 = vcmp.eq.s32.totalorder %v158, 1
    %v161 = vsel %vm159, 0.0, %v156
    %v162 = vsel %vm160, 0.0, %v155
    %v163 = vrot.slane %v119, 1
    %v164 = vrot.slane %v120, 1
    %vm165 = vcmp.lt.s32.totalorder %v122, 7
    %v166 = vsel %vm165, %v163, %v164
    %v167 = vsel %vm165, %v164, %v163
    %v168 = vsel %vm150, 1, 0
    %v169 = vsel %vm151, 1, 0
    %vm170 = vcmp.eq.s32.totalorder %v168, 1
    %vm171 = vcmp.eq.s32.totalorder %v169, 1
    %v172 = vsel %vm170, 0.0, %v166
    %v173 = vsel %vm171, 0.0, %v167
    %176 = vrot.lane.b32.xlu0 %v119, 32
    %v177 = vpop.permute.xlu0 %176
    %178 = vrot.lane.b32.xlu0 %v120, 32
    %v179 = vpop.permute.xlu0 %178
    %184 = vrot.lane.b32.xlu0 %v172, 64
    %v185 = vpop.permute.xlu0 %184
    %186 = vrot.lane.b32.xlu0 %v173, 64
    %v187 = vpop.permute.xlu0 %186
    %vm190 = vcmask 261120
    %v191 = vsel %vm190, %v161, %v177
    %v192 = vsel %vm190, %v162, %v179
    %vm193 = vcmask 523264
    %v194 = vsel %vm193, %v191, %v185
    %v195 = vsel %vm193, %v192, %v187
    %v196 = vld [vmem:[#allocation5] sm:$0xf]
    %v197 = vld [vmem:[#allocation5 + $0x4] sm:$0xf]
    %v198 = vld [vmem:[#allocation5 + $0x8] sm:$0xf]
    %v199 = vld [vmem:[#allocation5 + $0xc] sm:$0xf]
    %v200 = vld [vmem:[#allocation5 + $0x10] sm:$0xf]
    %v201 = vld [vmem:[#allocation5 + $0x14] sm:$0xf]
    %v202 = vld [vmem:[#allocation5 + $0x18] sm:$0xf]
    %v203 = vld [vmem:[#allocation5 + $0x1c] sm:$0xf]
    %v204 = vld [vmem:[#allocation5 + $0x20] sm:$0xf]
    %v205 = vld [vmem:[#allocation5 + $0x24] sm:$0xf]
    %v206 = vld [vmem:[#allocation5 + $0x28] sm:$0xf]
    %v207 = vld [vmem:[#allocation5 + $0x2c] sm:$0xf]
    %v208 = vpack.c.bf16 %v195, %v194
    %v209 = vld [vmem:[#allocation7] sm:$0x1]
    %v211 = vlaneseq
    %v212 = vshrl.u32 %v211, 7
    %v213 = vsub.s32 0, %v212
    %v214 = vrot.slane %v209, %v213
    %v228 = vunpack.c.l.b16 %v196
    %v229 = vunpack.c.l.b16 %v197
    %v230 = vunpack.c.l.b16 %v198
    %v231 = vunpack.c.l.b16 %v199
    %v232 = vunpack.c.l.b16 %v200
    %v233 = vunpack.c.l.b16 %v201
    %v234 = vunpack.c.l.b16 %v202
    %v235 = vunpack.c.l.b16 %v203
    %v236 = vunpack.c.l.b16 %v204
    %v237 = vunpack.c.l.b16 %v205
    %v238 = vunpack.c.l.b16 %v206
    %v239 = vunpack.c.l.b16 %v207
    %v240 = vpack.c.b16 %v229, %v228
    %v241 = vpack.c.b16 %v231, %v230
    %v242 = vpack.c.b16 %v233, %v232
    %v243 = vpack.c.b16 %v235, %v234
    %v244 = vpack.c.b16 %v237, %v236
    %v245 = vpack.c.b16 %v239, %v238
    %vm252 = vcmask 785408
    %v254 = vsel %vm252, %v208, 0
    %256 = vmatprep.subr.bf16.mxu0 0
    %257 = vmatpush1.bf16.msra.mxu0 %v240
    %258 = vmatprep.subr.bf16.mxu0 0
    %259 = vmatpush1.bf16.msra.mxu0 %v241
    %260 = vmatprep.subr.bf16.mxu0 0
    %261 = vmatpush1.bf16.msra.mxu0 %v242
    %262 = vmatprep.subr.bf16.mxu0 0
    %263 = vmatpush1.bf16.msra.mxu0 %v243
    %264 = vmatprep.subr.bf16.mxu0 0
    %265 = vmatpush1.bf16.msra.mxu0 %v244
    %266 = vmatprep.subr.bf16.mxu0 0
    %267 = vmatpush1.bf16.msra.mxu0 %v245
    %268 = vmatprep.subr.bf16.mxu0 0
    %269 = vmatpush1.bf16.msra.mxu0 0
    %270 = vmatprep.subr.bf16.mxu0 0
    %271 = vmatpush1.bf16.msra.mxu0 0
    %272 = vmatprep.subr.bf16.mxu0 0
    %273 = vmatpush1.bf16.msra.mxu0 0
    %274 = vmatprep.subr.bf16.mxu0 0
    %275 = vmatpush1.bf16.msra.mxu0 0
    %276 = vmatprep.subr.bf16.mxu0 0
    %277 = vmatpush1.bf16.msra.mxu0 0
    %278 = vmatprep.subr.bf16.mxu0 0
    %279 = vmatpush1.bf16.msra.mxu0 0
    %280 = vmatprep.subr.bf16.mxu0 0
    %281 = vmatpush1.bf16.msra.mxu0 0
    %282 = vmatprep.subr.bf16.mxu0 0
    %283 = vmatpush1.bf16.msra.mxu0 0
    %284 = vmatprep.subr.bf16.mxu0 0
    %285 = vmatpush1.bf16.msra.mxu0 0
    %286 = vmatprep.subr.bf16.mxu0 0
    %287 = vmatpush1.bf16.msra.mxu0 0
    %288 = vmatprep.mubr.bf16.mxu0 0
    %289 = vmatmul.mubr.bf16.gmra.mrb[0].mxu0 %v254
    %v290 = vpop.f32.mrb[0].mxu0
    %v291 = vadd.f32 %v214, %v290
    %v292 = vpop.f32.mrb[0].mxu0
    %v293 = vpop.f32.mrb[0].mxu0
    %v294 = vadd.f32 %v214, %v293
    %v295 = vpop.f32.mrb[0].mxu0
    %296 = vdwg.mxu0
    %vm297 = vcmp.gt.f32.partialorder %v291, 0.0
    %vm298 = vcmp.gt.f32.partialorder %v294, 0.0
    %v299 = vmul.f32 %v291, 0.2
    %v300 = vmul.f32 %v294, 0.2
    %v301 = vsel %vm297, %v291, %v299
    %v302 = vsel %vm298, %v294, %v300
    %v303 = vlaneseq
    %v304 = vand.u32 %v303, 127
    %vm305 = vcmp.lt.s32.totalorder %v304, 24
    %v306 = vrot.slane %v301, 7
    %v307 = vrot.slane %v302, 7
    %v308 = vsel %vm154, %v306, %v307
    %v309 = vsel %vm154, %v307, %v306
    %v310 = vsel %vm159, 0.0, %v309
    %v311 = vsel %vm160, 0.0, %v308
    %vm312 = vcmp.lt.s32.totalorder %v304, 72
    %v313 = vrot.slane %v301, 1
    %v314 = vrot.slane %v302, 1
    %v315 = vsel %vm165, %v313, %v314
    %v316 = vsel %vm165, %v314, %v313
    %v317 = vsel %vm170, 0.0, %v315
    %v318 = vsel %vm171, 0.0, %v316
    %v319 = vsel %vm312, %v301, %v317
    %v320 = vsel %vm312, %v302, %v318
    %v321 = vsel %vm305, %v310, %v319
    %v322 = vsel %vm305, %v311, %v320
    %v323 = vld [vmem:[#allocation8] sm:$0xf]
    %v324 = vld [vmem:[#allocation8 + $0x4] sm:$0xf]
    %v325 = vld [vmem:[#allocation8 + $0x8] sm:$0xf]
    %v326 = vld [vmem:[#allocation8 + $0xc] sm:$0xf]
    %v327 = vld [vmem:[#allocation8 + $0x10] sm:$0xf]
    %v328 = vld [vmem:[#allocation8 + $0x14] sm:$0xf]
    %v329 = vld [vmem:[#allocation8 + $0x18] sm:$0xf]
    %v330 = vld [vmem:[#allocation8 + $0x1c] sm:$0xf]
    %v331 = vld [vmem:[#allocation8 + $0x20] sm:$0xf]
    %v332 = vld [vmem:[#allocation8 + $0x24] sm:$0xf]
    %v333 = vld [vmem:[#allocation8 + $0x28] sm:$0xf]
    %v334 = vld [vmem:[#allocation8 + $0x2c] sm:$0xf]
    %v335 = vpack.c.bf16 %v322, %v321
    %v336 = vld [vmem:[#allocation10] sm:$0x1]
    %v338 = vlaneseq
    %v339 = vshrl.u32 %v338, 7
    %v340 = vsub.s32 0, %v339
    %v341 = vrot.slane %v336, %v340
    %v355 = vunpack.c.l.b16 %v323
    %v356 = vunpack.c.l.b16 %v324
    %v357 = vunpack.c.l.b16 %v325
    %v358 = vunpack.c.l.b16 %v326
    %v359 = vunpack.c.l.b16 %v327
    %v360 = vunpack.c.l.b16 %v328
    %v361 = vunpack.c.l.b16 %v329
    %v362 = vunpack.c.l.b16 %v330
    %v363 = vunpack.c.l.b16 %v331
    %v364 = vunpack.c.l.b16 %v332
    %v365 = vunpack.c.l.b16 %v333
    %v366 = vunpack.c.l.b16 %v334
    %v367 = vpack.c.b16 %v356, %v355
    %v368 = vpack.c.b16 %v358, %v357
    %v369 = vpack.c.b16 %v360, %v359
    %v370 = vpack.c.b16 %v362, %v361
    %v371 = vpack.c.b16 %v364, %v363
    %v372 = vpack.c.b16 %v366, %v365
    %v380 = vsel %vm252, %v335, 0
    %382 = vmatprep.subr.bf16.mxu0 0
    %383 = vmatpush1.bf16.msra.mxu0 %v367
    %384 = vmatprep.subr.bf16.mxu0 0
    %385 = vmatpush1.bf16.msra.mxu0 %v368
    %386 = vmatprep.subr.bf16.mxu0 0
    %387 = vmatpush1.bf16.msra.mxu0 %v369
    %388 = vmatprep.subr.bf16.mxu0 0
    %389 = vmatpush1.bf16.msra.mxu0 %v370
    %390 = vmatprep.subr.bf16.mxu0 0
    %391 = vmatpush1.bf16.msra.mxu0 %v371
    %392 = vmatprep.subr.bf16.mxu0 0
    %393 = vmatpush1.bf16.msra.mxu0 %v372
    %394 = vmatprep.subr.bf16.mxu0 0
    %395 = vmatpush1.bf16.msra.mxu0 0
    %396 = vmatprep.subr.bf16.mxu0 0
    %397 = vmatpush1.bf16.msra.mxu0 0
    %398 = vmatprep.subr.bf16.mxu0 0
    %399 = vmatpush1.bf16.msra.mxu0 0
    %400 = vmatprep.subr.bf16.mxu0 0
    %401 = vmatpush1.bf16.msra.mxu0 0
    %402 = vmatprep.subr.bf16.mxu0 0
    %403 = vmatpush1.bf16.msra.mxu0 0
    %404 = vmatprep.subr.bf16.mxu0 0
    %405 = vmatpush1.bf16.msra.mxu0 0
    %406 = vmatprep.subr.bf16.mxu0 0
    %407 = vmatpush1.bf16.msra.mxu0 0
    %408 = vmatprep.subr.bf16.mxu0 0
    %409 = vmatpush1.bf16.msra.mxu0 0
    %410 = vmatprep.subr.bf16.mxu0 0
    %411 = vmatpush1.bf16.msra.mxu0 0
    %412 = vmatprep.subr.bf16.mxu0 0
    %413 = vmatpush1.bf16.msra.mxu0 0
    %414 = vmatprep.mubr.bf16.mxu0 0
    %415 = vmatmul.mubr.bf16.gmra.mrb[0].mxu0 %v380
    %v416 = vpop.f32.mrb[0].mxu0
    %v417 = vadd.f32 %v341, %v416
    %v418 = vpop.f32.mrb[0].mxu0
    %v419 = vpop.f32.mrb[0].mxu0
    %v420 = vadd.f32 %v341, %v419
    %v421 = vpop.f32.mrb[0].mxu0
    %422 = vdwg.mxu0
    %vm423 = vcmp.gt.f32.partialorder %v417, 0.0
    %vm424 = vcmp.gt.f32.partialorder %v420, 0.0
    %v425 = vmul.f32 %v417, 0.2
    %v426 = vmul.f32 %v420, 0.2
    %v427 = vsel %vm423, %v417, %v425
    %v428 = vsel %vm424, %v420, %v426
    %v429 = vld [vmem:[#allocation11] sm:$0xf]
    %v430 = vld [vmem:[#allocation11 + $0x4] sm:$0xf]
    %v431 = vld [vmem:[#allocation11 + $0x8] sm:$0xf]
    %v432 = vld [vmem:[#allocation11 + $0xc] sm:$0xf]
    %v433 = vld [vmem:[#allocation11 + $0x10] sm:$0xf]
    %v434 = vld [vmem:[#allocation11 + $0x14] sm:$0xf]
    %v435 = vld [vmem:[#allocation11 + $0x18] sm:$0xf]
    %v436 = vld [vmem:[#allocation11 + $0x1c] sm:$0xf]
    %v437 = vpack.c.bf16 %v428, %v427
    %v438 = vld [vmem:[#allocation13] sm:$0x1]
    %v440 = vlaneseq
    %v441 = vshrl.u32 %v440, 7
    %v442 = vsub.s32 0, %v441
    %v443 = vrot.slane %v438, %v442
    %v453 = vunpack.c.l.b16 %v429
    %v454 = vunpack.c.l.b16 %v430
    %v455 = vunpack.c.l.b16 %v431
    %v456 = vunpack.c.l.b16 %v432
    %v457 = vunpack.c.l.b16 %v433
    %v458 = vunpack.c.l.b16 %v434
    %v459 = vunpack.c.l.b16 %v435
    %v460 = vunpack.c.l.b16 %v436
    %v461 = vpack.c.b16 %v454, %v453
    %v462 = vpack.c.b16 %v456, %v455
    %v463 = vpack.c.b16 %v458, %v457
    %v464 = vpack.c.b16 %v460, %v459
    %v470 = vsel %vm193, %v437, 0
    %472 = vmatprep.subr.bf16.mxu0 0
    %473 = vmatpush1.bf16.msra.mxu0 %v461
    %474 = vmatprep.subr.bf16.mxu0 0
    %475 = vmatpush1.bf16.msra.mxu0 %v462
    %476 = vmatprep.subr.bf16.mxu0 0
    %477 = vmatpush1.bf16.msra.mxu0 %v463
    %478 = vmatprep.subr.bf16.mxu0 0
    %479 = vmatpush1.bf16.msra.mxu0 %v464
    %480 = vmatprep.subr.bf16.mxu0 0
    %481 = vmatpush1.bf16.msra.mxu0 0
    %482 = vmatprep.subr.bf16.mxu0 0
    %483 = vmatpush1.bf16.msra.mxu0 0
    %484 = vmatprep.subr.bf16.mxu0 0
    %485 = vmatpush1.bf16.msra.mxu0 0
    %486 = vmatprep.subr.bf16.mxu0 0
    %487 = vmatpush1.bf16.msra.mxu0 0
    %488 = vmatprep.subr.bf16.mxu0 0
    %489 = vmatpush1.bf16.msra.mxu0 0
    %490 = vmatprep.subr.bf16.mxu0 0
    %491 = vmatpush1.bf16.msra.mxu0 0
    %492 = vmatprep.subr.bf16.mxu0 0
    %493 = vmatpush1.bf16.msra.mxu0 0
    %494 = vmatprep.subr.bf16.mxu0 0
    %495 = vmatpush1.bf16.msra.mxu0 0
    %496 = vmatprep.subr.bf16.mxu0 0
    %497 = vmatpush1.bf16.msra.mxu0 0
    %498 = vmatprep.subr.bf16.mxu0 0
    %499 = vmatpush1.bf16.msra.mxu0 0
    %500 = vmatprep.subr.bf16.mxu0 0
    %501 = vmatpush1.bf16.msra.mxu0 0
    %502 = vmatprep.subr.bf16.mxu0 0
    %503 = vmatpush1.bf16.msra.mxu0 0
    %504 = vmatprep.mubr.bf16.mxu0 0
    %505 = vmatmul.mubr.bf16.gmra.mrb[0].mxu0 %v470
    %v506 = vpop.f32.mrb[0].mxu0
    %v507 = vadd.f32 %v443, %v506
    %v508 = vpop.f32.mrb[0].mxu0
    %v509 = vpop.f32.mrb[0].mxu0
    %v510 = vadd.f32 %v443, %v509
    %v511 = vpop.f32.mrb[0].mxu0
    %512 = vdwg.mxu0
    %513 = vst.msk [vmem:[#allocation14] sm:$0xff] %vm193, %v507
    %514 = vst.msk [vmem:[#allocation14 + $0x8] sm:$0xff] %vm193, %v510
    // Predicated region
    $region58: #{tpu_custom_call.1} parent=1 // pred_check
      _
    $region59: #{tpu_custom_call.1} parent=1 // pred_check_branch
      %516 = sbr.rel (0) target = $region61
    $region60: #{tpu_custom_call.1} parent=1 // pred_region
      %s518 = ssub.s32 256, 256
      %519 = vsyncadd [#allocation4], %s518
      %s520 = sshll.u32 [#allocation14], 4
      %s521 = int_to_ptr.vmem [resolvable:$true] %s520
      %526 = dma.vmem_to_hbm [thread:$0]  %s521, 256, %s7, [#allocation4], 128, 128, 8
    $region61: #{tpu_custom_call.1} parent=1 // pred_fallthru
      _
    // Predicated region
    $region62: #{tpu_custom_call.1} parent=1 // pred_check
      _
    $region63: #{tpu_custom_call.1} parent=1 // pred_check_branch
      %528 = sbr.rel (0) target = $region65
    $region64: #{tpu_custom_call.1} parent=1 // pred_region
      %529 = dma.done [#allocation4], 256
    $region65: #{tpu_custom_call.1} parent=1 // pred_fallthru
      _
    %530 = vsyncpa [#allocation3], 1
    %531 = vsyncpa [#allocation6], 1
    %532 = vsyncpa [#allocation9], 1
    %533 = vsyncpa [#allocation12], 1
    %534 = vsyncpa [#allocation4], 1

</llo_original>
